<compile_context>
chip_gen: v7x
topology: tpu7x:2x2x1
jax: 0.10.0
libtpu: 0.0.40
codegen_flags: <defaults>
</compile_context>

<pallas_src>
import functools
import math

import numpy as np
import jax
import jax.numpy as jnp
from jax import lax
from jax.experimental import pallas as pl
from jax.experimental.pallas import tpu as pltpu

LANES = 128      # vreg lane width
SUBLANES = 8     # vreg sublane depth (f32)


# ----------------------------------------------------------------------------
# Weight construction (faithful port of LatLonLoss.set_task_type)
# ----------------------------------------------------------------------------
# Synthetic range (the original module reads a global `x_range`); chosen so
# that height == width == 16, matching the small example shapes.
X_RANGE = dict(bottom=-8.0, top=8.0, height=16, left=0.0, right=16.0, width=16)


def make_latlon_weights(ran):
    height, width = ran['height'], ran['width']
    # weights[i, j] = w_lat[j] * w_lon[i] only makes sense for square grids.
    assert height == width, "LatLonLoss weight grid assumes H == W"

    step = (ran['top'] - ran['bottom']) / height
    lat = ran['bottom'] + step * np.arange(height, dtype=np.float64)
    w_lat = np.cos(lat * np.pi / 180.0)
    w_lat = height * w_lat / np.sum(w_lat)
    w_lat = np.tile(w_lat, (height, 1))                     # (H, H)

    step = (ran['right'] - ran['left']) / width
    lon = ran['left'] + step * np.arange(width, dtype=np.float64)
    w_lon = np.cos(lon * np.pi / 180.0)
    w_lon = width * w_lon / np.sum(w_lon)
    w_lon = np.tile(w_lon, (width, 1))                      # (W, W)

    # TODO(synk): torch keeps these weights in float64; cast to f32 for TPU.
    return (w_lat * w_lon.T).astype(np.float32)             # (H, W)


# ----------------------------------------------------------------------------
# Helpers
# ----------------------------------------------------------------------------
def _cdiv(a, b):
    return -(-a // b)


def _round_up(a, b):
    return _cdiv(a, b) * b


def _vmem_capacity_bytes():
    try:
        cap = getattr(pltpu.get_tpu_info(), "vmem_capacity_bytes", None)
        if cap:
            return int(cap)
    except Exception:
        pass
    return 64 << 20   # conservative default (v7x per-core VMEM)


# ----------------------------------------------------------------------------
# Pallas kernel: chunked weighted-L1 partial sums, folded to one (8, 128) vreg
# ----------------------------------------------------------------------------
def _latlon_partial_kernel(o_ref, t_ref, w_ref, p_ref, *,
                           tile_rows, chunk_rows, n_chunks, unroll,
                           rows_valid, mask_tail):
    # o_ref / t_ref : (tile_rows, 128) streaming tiles.
    # w_ref         : (chunk_rows, 128) weight pattern, VMEM-resident.
    # p_ref         : (8, 128) per-tile partial sum.
    w = w_ref[...]                                   # hoisted out of the loop
    tile_base = pl.program_id(0) * tile_rows

    def body(c, acc):
        r = pl.multiple_of(c * chunk_rows, chunk_rows)
        d = jnp.abs(o_ref[pl.ds(r, chunk_rows), :]
                    - t_ref[pl.ds(r, chunk_rows), :]) * w
        if mask_tail:
            # Last tile may extend past the real array: zero the padded rows
            # (their values are unspecified) so they don't bias the sum.
            row = (tile_base + r
                   + lax.broadcasted_iota(jnp.int32, (chunk_rows, LANES), 0))
            d = jnp.where(row < rows_valid, d, 0.0)
        # (chunk_rows, 128) -> (chunk_rows//8, 8, 128) is layout-preserving;
        # the axis-0 sum is pure VPU vreg adds into the (8,128) accumulator.
        return acc + jnp.sum(d.reshape(chunk_rows // SUBLANES, SUBLANES, LANES),
                             axis=0)

    acc = lax.fori_loop(0, n_chunks, body,
                        jnp.zeros((SUBLANES, LANES), jnp.float32),
                        unroll=unroll)
    p_ref[...] = acc


# ----------------------------------------------------------------------------
# Wrapper
# ----------------------------------------------------------------------------
def latlon_loss(output, target, weights, *, force_pallas=False):
    """output, target: (B, C, H, W) float32;  weights: (H, W) float32."""
    B, C, H, W = output.shape
    assert target.shape == output.shape
    assert weights.shape == (H, W)
    total_elems = B * C * H * W

    output = output.astype(jnp.float32)
    target = target.astype(jnp.float32)
    weights = weights.astype(jnp.float32)
    # TODO(synk): accept bf16 activations (upcast per-chunk) if the upstream
    #             contract allows it — would ~halve HBM traffic.

    # Tiny problems: pallas_call launch/pipeline overhead dominates; XLA's
    # fused reduce is as fast or faster. (force_pallas=True overrides.)
    if not force_pallas and total_elems * 4 <= (512 << 10):
        return jnp.mean(jnp.abs(output - target) * weights[None, None, :, :])

    # Lane-dense flattening requires one (H, W) field to be a whole number of
    # 128-lane rows (true for the module's grids; 16*16 = 256 = 2 rows).
    assert (H * W) % LANES == 0, "H*W must be a multiple of 128"
    # TODO(synk): pad the flattened arrays to handle H*W not divisible by 128.

    period = (H * W) // LANES               # rows per (H, W) field
    rows_total = B * C * period             # total lane-dense rows

    # ---- chunk / tile / grid sizing --------------------------------------
    # chunk: multiple of lcm(period, 8) so the weight pattern aligns and the
    # (chunk//8, 8, 128) fold is clean; target ~256 rows (128 KiB per input).
    unit = period * SUBLANES // math.gcd(period, SUBLANES)
    half = _round_up(_cdiv(rows_total, 2), unit)
    chunk_rows = min(unit * max(1, 256 // unit), half)
    chunk_bytes = chunk_rows * LANES * 4

    vmem_cap = _vmem_capacity_bytes()
    # per-input tile target: 8 MiB on 128 MiB-VMEM parts (v5e/v6e), 4 MiB on v7x.
    target_rows = 16384 if vmem_cap >= (100 << 20) else 8192

    # Force >=2 tiles whenever there is enough data (lights up both v7x TCs);
    # re-derive n_tiles from the final tile_rows so every tile (incl. the
    # last) starts in-bounds — no fully-OOB blocks, no dropped tail.
    n_want = max(2, _cdiv(rows_total, target_rows)) if rows_total > chunk_rows else 1
    tile_rows = _round_up(_cdiv(rows_total, n_want), chunk_rows)
    n_tiles = _cdiv(rows_total, tile_rows)
    n_chunks = tile_rows // chunk_rows
    mask_tail = (n_tiles * tile_rows) != rows_total
    unroll = max(1, min(n_chunks, 8, (2 << 20) // chunk_bytes))

    tile_bytes = tile_rows * LANES * 4
    # 2 inputs x 2 pipeline buffers + resident weights (x2) + chunk temps + headroom.
    vmem_needed = 4 * tile_bytes + 4 * chunk_bytes + (8 << 20)
    vmem_limit = int(min(max(vmem_needed, 32 << 20), int(0.8 * vmem_cap)))

    o = output.reshape(rows_total, LANES)
    t = target.reshape(rows_total, LANES)
    # Weights materialized only at CHUNK size (~128 KiB), not full tile size;
    # constant index_map keeps them VMEM-resident across the whole grid.
    w_chunk = jnp.tile(weights.reshape(period, LANES), (chunk_rows // period, 1))

    kernel = functools.partial(
        _latlon_partial_kernel,
        tile_rows=tile_rows, chunk_rows=chunk_rows, n_chunks=n_chunks,
        unroll=unroll, rows_valid=rows_total, mask_tail=mask_tail)

    partials = pl.pallas_call(
        kernel,
        out_shape=jax.ShapeDtypeStruct((n_tiles * SUBLANES, LANES), jnp.float32),
        grid_spec=pltpu.PrefetchScalarGridSpec(
            num_scalar_prefetch=0,
            grid=(n_tiles,),
            in_specs=[
                pl.BlockSpec((tile_rows, LANES), lambda i: (i, 0)),   # output tile
                pl.BlockSpec((tile_rows, LANES), lambda i: (i, 0)),   # target tile
                pl.BlockSpec((chunk_rows, LANES), lambda i: (0, 0)),  # weights (resident)
            ],
            out_specs=pl.BlockSpec((SUBLANES, LANES), lambda i: (i, 0)),
        ),
        compiler_params=pltpu.CompilerParams(
            # Independent output blocks -> parallel (shards across v7x's 2 TCs).
            dimension_semantics=("parallel",),
            vmem_limit_bytes=vmem_limit,
        ),
    )(o, t, w_chunk)

    # Tiny XLA epilogue: cross-lane/sublane reduce + mean normalization.
    return jnp.sum(partials) / jnp.float32(total_elems)


# ----------------------------------------------------------------------------
if __name__ == "__main__":
    weights = jnp.asarray(make_latlon_weights(X_RANGE))     # (16, 16) float32
    key = jax.random.PRNGKey(0)

    # ---- case 1: module's small shape, forced through the Pallas kernel ----
    B, C, H, W = 2, 4, 16, 16
    k1, k2, key = jax.random.split(key, 3)
    output = jax.random.normal(k1, (B, C, H, W), dtype=jnp.float32)
    target = jax.random.normal(k2, (B, C, H, W), dtype=jnp.float32)

    loss = jax.block_until_ready(latlon_loss(output, target, weights,
                                             force_pallas=True))
    ref = jnp.mean(jnp.abs(output - target) * weights[None, None, :, :])
    assert np.allclose(np.asarray(loss), np.asarray(ref),
                       rtol=1e-5, atol=1e-6), f"pallas={loss} ref={ref}"

    # Auto path (tiny problem short-circuits to the fused XLA reduce).
    loss_auto = jax.block_until_ready(latlon_loss(output, target, weights))
    assert np.allclose(np.asarray(loss_auto), np.asarray(ref),
                       rtol=1e-5, atol=1e-6), f"auto={loss_auto} ref={ref}"

    # ---- case 2: odd batch/channel count -> exercises the masked tail tile --
    B2, C2 = 3, 5
    k3, k4, key = jax.random.split(key, 3)
    out2 = jax.random.normal(k3, (B2, C2, H, W), dtype=jnp.float32)
    tgt2 = jax.random.normal(k4, (B2, C2, H, W), dtype=jnp.float32)

    loss2 = jax.block_until_ready(latlon_loss(out2, tgt2, weights,
                                              force_pallas=True))
    ref2 = jnp.mean(jnp.abs(out2 - tgt2) * weights[None, None, :, :])
    assert np.allclose(np.asarray(loss2), np.asarray(ref2),
                       rtol=1e-5, atol=1e-6), f"pallas={loss2} ref={ref2}"

    print("KERNEL_OK")
</pallas_src>

<mosaic_0001>
module attributes {stable_mosaic.version = 11 : i64} {
  func.func @_latlon_partial_kernel(%arg0: i32, %arg1: memref<8x128xf32, #tpu.memory_space<vmem>>, %arg2: memref<8x128xf32, #tpu.memory_space<vmem>>, %arg3: memref<8x128xf32, #tpu.memory_space<vmem>>, %arg4: memref<8x128xf32, #tpu.memory_space<vmem>>) attributes {dimension_semantics = [#tpu.dimension_semantics<parallel>], iteration_bounds = array<i64: 2>, scalar_prefetch = 0 : i64, scratch_operands = 0 : i64, tpu.core_type = #tpu.core_type<tc>, window_params = [{transform_indices = @transform_0, window_bounds = array<i64: 8, 128>}, {transform_indices = @transform_1, window_bounds = array<i64: 8, 128>}, {pipeline_mode = #tpu.pipeline_mode<synchronous>, transform_indices = @transform_2, window_bounds = array<i64: 8, 128>}, {transform_indices = @transform_3, window_bounds = array<i64: 8, 128>}]} {
    %c0 = arith.constant 0 : index
    %c0_0 = arith.constant 0 : index
    %0 = vector.load %arg3[%c0, %c0_0] : memref<8x128xf32, #tpu.memory_space<vmem>>, vector<8x128xf32>
    %cst = arith.constant 0.000000e+00 : f32
    %1 = vector.broadcast %cst : f32 to vector<8x128xf32>
    %c0_i32 = arith.constant 0 : i32
    %c8_i32 = arith.constant 8 : i32
    %2 = arith.muli %c0_i32, %c8_i32 : i32
    %3 = tpu.assume_multiple %2, 8 : i32
    %4 = arith.index_cast %3 : i32 to index
    %c0_1 = arith.constant 0 : index
    %5 = vector.load %arg1[%4, %c0_1] : memref<8x128xf32, #tpu.memory_space<vmem>>, vector<8x128xf32>
    %6 = arith.index_cast %3 : i32 to index
    %c0_2 = arith.constant 0 : index
    %7 = vector.load %arg2[%6, %c0_2] : memref<8x128xf32, #tpu.memory_space<vmem>>, vector<8x128xf32>
    %8 = arith.subf %5, %7 : vector<8x128xf32>
    %9 = math.absf %8 : vector<8x128xf32>
    %10 = arith.mulf %9, %0 : vector<8x128xf32>
    %11 = vector.shape_cast %10 : vector<8x128xf32> to vector<1x8x128xf32>
    %cst_3 = arith.constant dense<0.000000e+00> : vector<8x128xf32>
    %12 = vector.multi_reduction <add>, %11, %cst_3 [0] : vector<1x8x128xf32> to vector<8x128xf32>
    %13 = arith.addf %1, %12 : vector<8x128xf32>
    %c1_i32 = arith.constant 1 : i32
    %c0_4 = arith.constant 0 : index
    %c0_5 = arith.constant 0 : index
    %14 = vector.load %arg4[%c0_4, %c0_5] : memref<8x128xf32, #tpu.memory_space<vmem>>, vector<8x128xf32>
    tpu.vector_store %arg4[%c0_4, %c0_5], %13 {strides = array<i32>} : memref<8x128xf32, #tpu.memory_space<vmem>>, vector<8x128xf32>,
    return
  }
  func.func @transform_0(%arg0: i32) -> (i32, i32) {
    %c0_i32 = arith.constant 0 : i32
    %c0_i32_0 = arith.constant 0 : i32
    return %arg0, %c0_i32 : i32, i32
  }
  func.func @transform_1(%arg0: i32) -> (i32, i32) {
    %c0_i32 = arith.constant 0 : i32
    %c0_i32_0 = arith.constant 0 : i32
    return %arg0, %c0_i32 : i32, i32
  }
  func.func @transform_2(%arg0: i32) -> (i32, i32) {
    %c0_i32 = arith.constant 0 : i32
    %c0_i32_0 = arith.constant 0 : i32
    %c0_i32_1 = arith.constant 0 : i32
    return %c0_i32, %c0_i32_0 : i32, i32
  }
  func.func @transform_3(%arg0: i32) -> (i32, i32) {
    %c0_i32 = arith.constant 0 : i32
    %c0_i32_0 = arith.constant 0 : i32
    return %arg0, %c0_i32 : i32, i32
  }
}

</mosaic_0001>

<llo_original>
// kernel: tpu_custom_call.1
$region0: #{tpu_custom_call.1}
  #allocation0 [shape = 'u32[]', space=smem, size = 0x4, offset = 0x4, fixed_abs, tag = 'smem constant byte address 0x4 - core index']
  #allocation1 [shape = 'u32[144,128]{1,0:T(1,128)}', space=vmem, size = 0x12000, scoped, tag = 'internal scratch']
  %s0 = inlined_call_operand.hbm [shape: f32[16,128], index: 0, kind: input, shape index: {}]
  %s1 = inlined_call_operand.hbm [shape: f32[16,128], index: 1, kind: input, shape index: {}]
  %s2 = inlined_call_operand.hbm [shape: f32[8,128], index: 2, kind: input, shape index: {}]
  %s3 = inlined_call_operand.hbm [shape: f32[16,128], index: 3, kind: output, shape index: {}]
  %s4 = sld [smem:[#allocation0]]
  $region57: #{tpu_custom_call.1} parent=0
    _
  %s6 = ssub.s32 1, %s4
  %s7 = scalar_select 0, %s6, %s4
  $region1: #{tpu_custom_call.1} parent=0
    #allocation2 [shape = 'u8[8192]{0}', space=vmem, size = 0x2000, scoped, tag = 'input window, operand 0']
    #allocation3 [shape = 's32[2]{0}', space=sflag, size = 0x8, scoped, tag = 'scoped memory for tpu_custom_call.1']
    #allocation4 [shape = 's32[2]{0}', space=sflag, size = 0x8, scoped, tag = 'scoped memory for tpu_custom_call.1']
    #allocation5 [shape = 'u8[8192]{0}', space=vmem, size = 0x2000, scoped, tag = 'input window, operand 1']
    #allocation6 [shape = 's32[2]{0}', space=sflag, size = 0x8, scoped, tag = 'scoped memory for tpu_custom_call.1']
    #allocation7 [shape = 'u8[4096]{0}', space=vmem, size = 0x1000, scoped, tag = 'input window, operand 2, single buffered']
    #allocation8 [shape = 'u8[8192]{0}', space=vmem, size = 0x2000, scoped, tag = 'output window, operand 0']
    %8 = vsyncpa [#allocation3], 0
    %s9 = scalar_lea.sflag [#allocation3], 1
    %10 = vsyncpa %s9, 0
    %11 = vsyncpa [#allocation6], 0
    %s12 = scalar_lea.sflag [#allocation6], 1
    %13 = vsyncpa %s12, 0
    %14 = vsyncpa [#allocation4], 0
    %s15 = scalar_lea.sflag [#allocation4], 1
    %16 = vsyncpa %s15, 0
    loop: start=0, step=1, limit=4
    $region2: #{tpu_custom_call.1} parent=1 // loop_pre_header
      _
    $region3: #{tpu_custom_call.1} parent=1 // loop_header
      %s18 = sphi 0, %s22
      %p19 = scmp.ge.s32.totalorder %s18, 4
      %s28 = sphi 0, %s30
      %s31 = sphi 0, %s28
      %s32 = sphi 0, %s31
      %s48 = sphi 0, %s32
      %s54 = sphi 0, %s56
      %s57 = sphi 0, %s54
      %s58 = sphi 0, %s57
      %s74 = sphi 0, %s58
      %s78 = sphi 0, %s78
      %s80 = sphi 0, %s78
      %s81 = sphi 0, %s80
      %s95 = sphi 0, %s81
      %s101 = sphi 0, %s103
      %s104 = sphi 0, %s101
      %s105 = sphi 0, %s104
      %s121 = sphi 0, %s105
    $region4: #{tpu_custom_call.1} parent=1 // loop_header_branch
      %21 = sbr.rel (%p19) target = $region8
    $region5: #{tpu_custom_call.1} parent=1 // loop_body
      %s23 = ssub.s32 %s18, 1
      %s24 = ssub.s32 %s18, 2
      %s25 = sadd.s32 %s18, 1
      %s26 = ssub.s32 %s18, %s25
      %p27 = scmp.eq.s32.totalorder %s26, 0
      %s29 = sadd.s32 %s28, 1
      %s30 = scalar_select %p27, %s28, %s29
      %p33 = pneg %p27
      %p34 = scmp.eq.s32.totalorder %s18, 1
      %p35 = por %p33, %p34
      %p36 = scmp.ne.s32.totalorder %s28, %s31
      %p37 = scmp.eq.s32.totalorder %s18, 0
      %p38 = por %p36, %p37
      %p39 = scmp.ne.s32.totalorder %s28, %s31
      %p40 = scmp.eq.s32.totalorder %s23, 1
      %p41 = por %p39, %p40
      %p42 = scmp.ne.s32.totalorder %s31, %s32
      %p43 = scmp.eq.s32.totalorder %s23, 0
      %p44 = por %p42, %p43
      %p45 = scmp.ne.s32.totalorder %s31, %s32
      %p46 = scmp.eq.s32.totalorder %s24, 1
      %p47 = por %p45, %p46
      %p49 = scmp.ne.s32.totalorder %s32, %s48
      %p50 = scmp.eq.s32.totalorder %s24, 0
      %p51 = por %p49, %p50
      %s52 = ssub.s32 %s18, %s25
      %p53 = scmp.eq.s32.totalorder %s52, 0
      %s55 = sadd.s32 %s54, 1
      %s56 = scalar_select %p53, %s54, %s55
      %p59 = pneg %p53
      %p60 = scmp.eq.s32.totalorder %s18, 1
      %p61 = por %p59, %p60
      %p62 = scmp.ne.s32.totalorder %s54, %s57
      %p63 = scmp.eq.s32.totalorder %s18, 0
      %p64 = por %p62, %p63
      %p65 = scmp.ne.s32.totalorder %s54, %s57
      %p66 = scmp.eq.s32.totalorder %s23, 1
      %p67 = por %p65, %p66
      %p68 = scmp.ne.s32.totalorder %s57, %s58
      %p69 = scmp.eq.s32.totalorder %s23, 0
      %p70 = por %p68, %p69
      %p71 = scmp.ne.s32.totalorder %s57, %s58
      %p72 = scmp.eq.s32.totalorder %s24, 1
      %p73 = por %p71, %p72
      %p75 = scmp.ne.s32.totalorder %s58, %s74
      %p76 = scmp.eq.s32.totalorder %s24, 0
      %p77 = por %p75, %p76
      %s79 = sadd.s32 %s78, 1
      %p82 = scmp.eq.s32.totalorder %s18, 1
      %p83 = scmp.ne.s32.totalorder %s78, %s80
      %p84 = scmp.eq.s32.totalorder %s18, 0
      %p85 = por %p83, %p84
      %p86 = scmp.ne.s32.totalorder %s78, %s80
      %p87 = scmp.eq.s32.totalorder %s23, 1
      %p88 = por %p86, %p87
      %p89 = scmp.ne.s32.totalorder %s80, %s81
      %p90 = scmp.eq.s32.totalorder %s23, 0
      %p91 = por %p89, %p90
      %p92 = scmp.ne.s32.totalorder %s80, %s81
      %p93 = scmp.eq.s32.totalorder %s24, 1
      %p94 = por %p92, %p93
      %p96 = scmp.ne.s32.totalorder %s81, %s95
      %p97 = scmp.eq.s32.totalorder %s24, 0
      %p98 = por %p96, %p97
      %s99 = ssub.s32 %s18, %s25
      %p100 = scmp.eq.s32.totalorder %s99, 0
      %s102 = sadd.s32 %s101, 1
      %s103 = scalar_select %p100, %s101, %s102
      %p106 = pneg %p100
      %p107 = scmp.eq.s32.totalorder %s18, 1
      %p108 = por %p106, %p107
      %p109 = scmp.ne.s32.totalorder %s101, %s104
      %p110 = scmp.eq.s32.totalorder %s18, 0
      %p111 = por %p109, %p110
      %p112 = scmp.ne.s32.totalorder %s101, %s104
      %p113 = scmp.eq.s32.totalorder %s23, 1
      %p114 = por %p112, %p113
      %p115 = scmp.ne.s32.totalorder %s104, %s105
      %p116 = scmp.eq.s32.totalorder %s23, 0
      %p117 = por %p115, %p116
      %p118 = scmp.ne.s32.totalorder %s104, %s105
      %p119 = scmp.eq.s32.totalorder %s24, 1
      %p120 = por %p118, %p119
      %p122 = scmp.ne.s32.totalorder %s105, %s121
      %p123 = scmp.eq.s32.totalorder %s24, 0
      %p124 = por %p122, %p123
      %p125 = scmp.le.s32.totalorder 1, %s18
      %p126 = scmp.lt.s32.totalorder %s18, 3
      %p127 = pnand %p125, %p126
      %p128 = pneg %p127
      // Predicated region
      $region9: #{tpu_custom_call.1} parent=5 // pred_check
        _
      $region10: #{tpu_custom_call.1} parent=5 // pred_check_branch
        %130 = sbr.rel (%p127) target = $region12
      $region11: #{tpu_custom_call.1} parent=5 // pred_region
        %s131 = ssub.s32 %s18, 1
        // Predicated region
        $region13: #{tpu_custom_call.1} parent=11 // pred_check
          %p132 = pneg %p91
        $region14: #{tpu_custom_call.1} parent=11 // pred_check_branch
          %134 = sbr.rel (%p132) target = $region16
        $region15: #{tpu_custom_call.1} parent=11 // pred_region
          %s136 = ssub.s32 128, 128
          %137 = vsyncadd [#allocation6], %s136
          %s139 = sshll.u32 [#allocation7], 4
          %s140 = int_to_ptr.vmem [resolvable:$true] %s139
          %142 = dma.hbm_to_vmem [thread:$0]  %s2, 128, %s140, [#allocation6]
        $region16: #{tpu_custom_call.1} parent=11 // pred_fallthru
          _
      $region12: #{tpu_custom_call.1} parent=5 // pred_fallthru
        _
      %p143 = scmp.lt.s32.totalorder %s18, 2
      // Predicated region
      $region17: #{tpu_custom_call.1} parent=5 // pred_check
        %p144 = pneg %p143
      $region18: #{tpu_custom_call.1} parent=5 // pred_check_branch
        %146 = sbr.rel (%p144) target = $region20
      $region19: #{tpu_custom_call.1} parent=5 // pred_region
        // Predicated region
        $region21: #{tpu_custom_call.1} parent=19 // pred_check
          %p147 = pneg %p38
        $region22: #{tpu_custom_call.1} parent=19 // pred_check_branch
          %149 = sbr.rel (%p147) target = $region24
        $region23: #{tpu_custom_call.1} parent=19 // pred_region
          %s150 = sand.u32 %s28, 1
          %s151 = scalar_lea.sflag [#allocation3], %s150
          %s152 = sand.u32 %s28, 1
          %s153 = smul.addr %s152, 8
          %s154 = scalar_lea.vmem [#allocation2], %s153
          %s156 = ssub.s32 128, 128
          %157 = vsyncadd %s151, %s156
          %s158 = smul.addr %s18, 128
          %s159 = scalar_lea.hbm %s0, %s158
          %s161 = sshll.u32 %s154, 4
          %s162 = int_to_ptr.vmem [resolvable:$true] %s161
          %164 = dma.hbm_to_vmem [thread:$0]  %s159, 128, %s162, %s151
        $region24: #{tpu_custom_call.1} parent=19 // pred_fallthru
          _
        // Predicated region
        $region25: #{tpu_custom_call.1} parent=19 // pred_check
          %p165 = pneg %p64
        $region26: #{tpu_custom_call.1} parent=19 // pred_check_branch
          %167 = sbr.rel (%p165) target = $region28
        $region27: #{tpu_custom_call.1} parent=19 // pred_region
          %s168 = sand.u32 %s18, 1
          %s169 = scalar_lea.sflag [#allocation6], %s168
          %s170 = sand.u32 %s54, 1
          %s171 = smul.addr %s170, 8
          %s172 = scalar_lea.vmem [#allocation5], %s171
          %s174 = ssub.s32 128, 128
          %175 = vsyncadd %s169, %s174
          %s176 = smul.addr %s18, 128
          %s177 = scalar_lea.hbm %s1, %s176
          %s179 = sshll.u32 %s172, 4
          %s180 = int_to_ptr.vmem [resolvable:$true] %s179
          %182 = dma.hbm_to_vmem [thread:$0]  %s177, 128, %s180, %s169
        $region28: #{tpu_custom_call.1} parent=19 // pred_fallthru
          _
      $region20: #{tpu_custom_call.1} parent=5 // pred_fallthru
        _
      %p183 = scmp.le.s32.totalorder 1, %s18
      %p184 = scmp.lt.s32.totalorder %s18, 3
      %p185 = pnand %p183, %p184
      %p186 = pneg %p185
      // Predicated region
      $region29: #{tpu_custom_call.1} parent=5 // pred_check
        _
      $region30: #{tpu_custom_call.1} parent=5 // pred_check_branch
        %188 = sbr.rel (%p185) target = $region32
      $region31: #{tpu_custom_call.1} parent=5 // pred_region
        %s189 = ssub.s32 %s18, 1
        %s190 = sand.u32 %s31, 1
        %s191 = scalar_lea.sflag [#allocation3], %s190
        %s192 = sand.u32 %s31, 1
        %s193 = smul.addr %s192, 8
        %s194 = scalar_lea.vmem [#allocation2], %s193
        // Predicated region
        $region33: #{tpu_custom_call.1} parent=31 // pred_check
          %p195 = pneg %p44
        $region34: #{tpu_custom_call.1} parent=31 // pred_check_branch
          %197 = sbr.rel (%p195) target = $region36
        $region35: #{tpu_custom_call.1} parent=31 // pred_region
          %198 = dma.done %s191, 128
        $region36: #{tpu_custom_call.1} parent=31 // pred_fallthru
          _
        %s199 = sand.u32 %s23, 1
        %s200 = scalar_lea.sflag [#allocation6], %s199
        %s201 = sand.u32 %s57, 1
        %s202 = smul.addr %s201, 8
        %s203 = scalar_lea.vmem [#allocation5], %s202
        // Predicated region
        $region37: #{tpu_custom_call.1} parent=31 // pred_check
          %p204 = pneg %p70
        $region38: #{tpu_custom_call.1} parent=31 // pred_check_branch
          %206 = sbr.rel (%p204) target = $region40
        $region39: #{tpu_custom_call.1} parent=31 // pred_region
          %207 = dma.done %s200, 128
        $region40: #{tpu_custom_call.1} parent=31 // pred_fallthru
          _
        // Predicated region
        $region41: #{tpu_custom_call.1} parent=31 // pred_check
          %p208 = pneg %p91
        $region42: #{tpu_custom_call.1} parent=31 // pred_check_branch
          %210 = sbr.rel (%p208) target = $region44
        $region43: #{tpu_custom_call.1} parent=31 // pred_region
          %211 = dma.done [#allocation6], 128
        $region44: #{tpu_custom_call.1} parent=31 // pred_fallthru
          _
        %s212 = sand.u32 %s31, 1
        %s213 = scalar_lea.sflag [#allocation3], %s212
        %s214 = sand.u32 %s31, 1
        %s215 = smul.addr %s214, 8
        %s216 = scalar_lea.vmem [#allocation2], %s215
        %p217 = pneg %p44
        %p218 = pneg %p41
        %s219 = sand.u32 %s23, 1
        %s220 = scalar_lea.sflag [#allocation6], %s219
        %s221 = sand.u32 %s57, 1
        %s222 = smul.addr %s221, 8
        %s223 = scalar_lea.vmem [#allocation5], %s222
        %p224 = pneg %p70
        %p225 = pneg %p67
        %p226 = pneg %p91
        %p227 = pneg %p88
        %p228 = pneg %p117
        %p229 = pneg %p114
        %s230 = sand.u32 %s104, 1
        %s231 = scalar_lea.sflag [#allocation4], %s230
        %s232 = sand.u32 %s104, 1
        %s233 = smul.addr %s232, 8
        %s234 = scalar_lea.vmem [#allocation8], %s233
        %v235 = vld [vmem:[#allocation7] sm:$0xff]
        %v236 = vld [vmem:[%s194] sm:$0xff]
        %v237 = vld [vmem:[%s203] sm:$0xff]
        %v238 = vsub.f32 %v236, %v237
        %v239 = vand.u32 2147483647, %v238
        %v240 = vmul.f32 %v239, %v235
        %v241 = vadd.f32 %v240, 0.0
        %v242 = vadd.f32 %v241, 0.0
        %243 = vst [vmem:[%s234] sm:$0xff] %v242
        %s244 = sand.u32 %s104, 1
        %s245 = scalar_lea.sflag [#allocation4], %s244
        %s246 = sand.u32 %s104, 1
        %s247 = smul.addr %s246, 8
        %s248 = scalar_lea.vmem [#allocation8], %s247
        // Predicated region
        $region45: #{tpu_custom_call.1} parent=31 // pred_check
          %p249 = pneg %p114
        $region46: #{tpu_custom_call.1} parent=31 // pred_check_branch
          %251 = sbr.rel (%p249) target = $region48
        $region47: #{tpu_custom_call.1} parent=31 // pred_region
          %s253 = ssub.s32 128, 128
          %254 = vsyncadd %s245, %s253
          %s255 = smul.addr %s23, 128
          %s256 = scalar_lea.hbm %s3, %s255
          %s258 = sshll.u32 %s248, 4
          %s259 = int_to_ptr.vmem [resolvable:$true] %s258
          %261 = dma.vmem_to_hbm [thread:$0]  %s259, 128, %s256, %s245
        $region48: #{tpu_custom_call.1} parent=31 // pred_fallthru
          _
      $region32: #{tpu_custom_call.1} parent=5 // pred_fallthru
        _
      %p262 = scmp.le.s32.totalorder 2, %s18
      // Predicated region
      $region49: #{tpu_custom_call.1} parent=5 // pred_check
        %p263 = pneg %p262
      $region50: #{tpu_custom_call.1} parent=5 // pred_check_branch
        %265 = sbr.rel (%p263) target = $region52
      $region51: #{tpu_custom_call.1} parent=5 // pred_region
        %s266 = ssub.s32 %s18, 2
        // Predicated region
        $region53: #{tpu_custom_call.1} parent=51 // pred_check
          %p267 = pneg %p120
        $region54: #{tpu_custom_call.1} parent=51 // pred_check_branch
          %269 = sbr.rel (%p267) target = $region56
        $region55: #{tpu_custom_call.1} parent=51 // pred_region
          %s270 = sand.u32 %s105, 1
          %s271 = scalar_lea.sflag [#allocation4], %s270
          %s272 = sand.u32 %s105, 1
          %s273 = smul.addr %s272, 8
          %s274 = scalar_lea.vmem [#allocation8], %s273
          %275 = dma.done %s271, 128
        $region56: #{tpu_custom_call.1} parent=51 // pred_fallthru
          _
      $region52: #{tpu_custom_call.1} parent=5 // pred_fallthru
        _
    $region6: #{tpu_custom_call.1} parent=1 // loop_footer
      %s22 = sadd.s32 1, %s18
    $region7: #{tpu_custom_call.1} parent=1 // loop_footer_branch
      %17 = sbr.rel target = $region3
    $region8: #{tpu_custom_call.1} parent=1 // loop_exit
      _
    %276 = vsyncpa [#allocation3], 1
    %s277 = scalar_lea.sflag [#allocation3], 1
    %278 = vsyncpa %s277, 1
    %279 = vsyncpa [#allocation6], 1
    %s280 = scalar_lea.sflag [#allocation6], 1
    %281 = vsyncpa %s280, 1
    %282 = vsyncpa [#allocation4], 1
    %s283 = scalar_lea.sflag [#allocation4], 1
    %284 = vsyncpa %s283, 1

</llo_original>
